<compile_context>
chip_gen: v7x
topology: tpu7x:2x2x1
jax: 0.10.0
libtpu: 0.0.40
codegen_flags: <defaults>
</compile_context>

<pallas_src>
import math

import jax
import jax.numpy as jnp
from jax.experimental import pallas as pl
from jax.experimental.pallas import tpu as pltpu


# ----------------------------------------------------------------------------- kernel

def generator_lstm_kernel(emb_ref, h_ref, c_ref,
                          w_ih_ref, w_hh_ref, b_ref,
                          w_fc_ref, b_fc_ref,
                          out_ref, h_out_ref, c_out_ref):
    emb = emb_ref[...]                                   # (B, H)
    h = h_ref[...]                                       # (B, H)
    c = c_ref[...]                                       # (B, H)
    H = h.shape[1]

    # Fused gates: two lane-dense (B,H)@(H,4H) MXU matmuls produce all four gates at once
    # (columns ordered i | f | g | o, matching PyTorch's LSTM weight layout).
    gates = (jnp.dot(emb, w_ih_ref[...], preferred_element_type=jnp.float32)
             + jnp.dot(h, w_hh_ref[...], preferred_element_type=jnp.float32)
             + b_ref[...])                               # (B, 4H)

    i = jax.nn.sigmoid(gates[:, 0 * H:1 * H])
    f = jax.nn.sigmoid(gates[:, 1 * H:2 * H])
    g = jnp.tanh(gates[:, 2 * H:3 * H])
    o = jax.nn.sigmoid(gates[:, 3 * H:4 * H])

    c_new = f * c + i * g
    h_new = o * jnp.tanh(c_new)
    h_out_ref[...] = h_new
    c_out_ref[...] = c_new

    # fc + log_softmax(dim=1). Output dim is padded to a multiple of 128 lanes; padded bias
    # lanes are -1e30 so they contribute exp(...) == 0 to the normalizer.
    logits = (jnp.dot(h_new, w_fc_ref[...], preferred_element_type=jnp.float32)
              + b_fc_ref[...])                           # (B, O_pad)
    m = jnp.max(logits, axis=1, keepdims=True)
    lse = jnp.log(jnp.sum(jnp.exp(logits - m), axis=1, keepdims=True)) + m
    out_ref[...] = logits - lse


# ----------------------------------------------------------------------------- wrapper

def _full_spec(a):
    nd = a.ndim
    return pl.BlockSpec(a.shape, lambda i, nd=nd: (0,) * nd)


def generator_lstm_forward(params, x, hidden, cell):
    """One GeneratorLSTM.forward step.

    x: (B,) int32 token ids; hidden/cell: (1, B, H) float32.
    Returns (log_probs (B, O), hidden (1, B, H), cell (1, B, H)).
    """
    B = x.shape[0]
    H = params["w_hh"].shape[1]
    O = params["w_fc"].shape[0]
    O_pad = ((O + 127) // 128) * 128

    # Embedding lookup (token gather) done in plain JAX; everything else runs in the kernel.
    emb = params["embedding"][x].astype(jnp.float32)                       # (B, H)
    h0 = hidden[0].astype(jnp.float32)                                     # (B, H)
    c0 = cell[0].astype(jnp.float32)                                       # (B, H)

    # Fused-gate weights: PyTorch (4H, H) rows [i|f|g|o] -> pre-transposed (H, 4H) columns.
    w_ih_f = params["w_ih"].T                                              # (H, 4H)
    w_hh_f = params["w_hh"].T                                              # (H, 4H)
    b_gates = (params["b_ih"] + params["b_hh"])[None, :]                   # (1, 4H)

    # Lane-dense fc: pad output dim to O_pad; padded bias lanes get -1e30 (log_softmax-safe).
    w_fc = jnp.pad(params["w_fc"].T, ((0, 0), (0, O_pad - O)))             # (H, O_pad)
    b_fc = jnp.pad(params["b_fc"][None, :], ((0, 0), (0, O_pad - O)),
                   constant_values=-1e30)                                  # (1, O_pad)

    args = (emb, h0, c0, w_ih_f, w_hh_f, b_gates, w_fc, b_fc)

    out, h1, c1 = pl.pallas_call(
        generator_lstm_kernel,
        out_shape=(jax.ShapeDtypeStruct((B, O_pad), jnp.float32),
                   jax.ShapeDtypeStruct((B, H), jnp.float32),
                   jax.ShapeDtypeStruct((B, H), jnp.float32)),
        grid=(1,),
        in_specs=[_full_spec(a) for a in args],
        out_specs=(pl.BlockSpec((B, O_pad), lambda i: (0, 0)),
                   pl.BlockSpec((B, H), lambda i: (0, 0)),
                   pl.BlockSpec((B, H), lambda i: (0, 0))),
        compiler_params=pltpu.CompilerParams(dimension_semantics=("arbitrary",)),
    )(*args)

    return out[:, :O], h1[None, :, :], c1[None, :, :]


# ----------------------------------------------------------------------------- params

def init_params(key, input_size, hidden_size, output_size):
    """Synthetic parameters in PyTorch layouts (nn.Embedding / nn.LSTM / nn.Linear)."""
    ks = jax.random.split(key, 7)
    s = 1.0 / math.sqrt(hidden_size)

    def u(k, shape):
        return jax.random.uniform(k, shape, jnp.float32, -s, s)

    return {
        "embedding": jax.random.normal(ks[0], (input_size, hidden_size), jnp.float32),
        "w_ih": u(ks[1], (4 * hidden_size, hidden_size)),   # rows ordered i|f|g|o
        "w_hh": u(ks[2], (4 * hidden_size, hidden_size)),
        "b_ih": u(ks[3], (4 * hidden_size,)),
        "b_hh": u(ks[4], (4 * hidden_size,)),
        "w_fc": u(ks[5], (output_size, hidden_size)),       # nn.Linear weight (O, H)
        "b_fc": u(ks[6], (output_size,)),
    }


# ----------------------------------------------------------------------------- pure-JAX reference

def reference_forward(params, x, hidden, cell):
    emb = params["embedding"][x]
    h0, c0 = hidden[0], cell[0]
    H = h0.shape[1]
    gates = (emb @ params["w_ih"].T + params["b_ih"]
             + h0 @ params["w_hh"].T + params["b_hh"])
    i = jax.nn.sigmoid(gates[:, 0 * H:1 * H])
    f = jax.nn.sigmoid(gates[:, 1 * H:2 * H])
    g = jnp.tanh(gates[:, 2 * H:3 * H])
    o = jax.nn.sigmoid(gates[:, 3 * H:4 * H])
    c1 = f * c0 + i * g
    h1 = o * jnp.tanh(c1)
    logits = h1 @ params["w_fc"].T + params["b_fc"]
    return jax.nn.log_softmax(logits, axis=1), h1[None, :, :], c1[None, :, :]


# ----------------------------------------------------------------------------- main

if __name__ == "__main__":
    input_size = 50      # vocab
    hidden_size = 32
    output_size = 50
    batch_size = 8       # sublane-full
    num_steps = 4        # chained single-step forwards (autoregressive-style usage)

    key = jax.random.PRNGKey(0)
    kp, kx, kh, kc = jax.random.split(key, 4)
    params = init_params(kp, input_size, hidden_size, output_size)

    tokens = jax.random.randint(kx, (num_steps, batch_size), 0, input_size, jnp.int32)
    # init_hidden_state()/init_cell_state() are zeros; use small random states to also
    # exercise the recurrent (W_hh / cell) paths.
    hidden = 0.1 * jax.random.normal(kh, (1, batch_size, hidden_size), jnp.float32)
    cell = 0.1 * jax.random.normal(kc, (1, batch_size, hidden_size), jnp.float32)
    ref_hidden, ref_cell = hidden, cell

    last_out = None
    for t in range(num_steps):
        out, hidden, cell = generator_lstm_forward(params, tokens[t], hidden, cell)
        out = jax.block_until_ready(out)
        last_out = out

        ref_out, ref_hidden, ref_cell = reference_forward(params, tokens[t], ref_hidden, ref_cell)
        assert out.shape == (batch_size, output_size), out.shape
        assert hidden.shape == (1, batch_size, hidden_size)
        assert cell.shape == (1, batch_size, hidden_size)
        assert jnp.allclose(out, ref_out, atol=1e-4, rtol=1e-4), \
            float(jnp.max(jnp.abs(out - ref_out)))
        assert jnp.allclose(hidden, ref_hidden, atol=1e-5, rtol=1e-5)
        assert jnp.allclose(cell, ref_cell, atol=1e-5, rtol=1e-5)

    # rows of a log-softmax must exponentiate to 1
    assert jnp.allclose(jnp.exp(last_out).sum(axis=-1), 1.0, atol=1e-3)

    print("KERNEL_OK")
</pallas_src>

<mosaic_0001>
module attributes {stable_mosaic.version = 11 : i64} {
  func.func @generator_lstm_kernel(%arg0: i32, %arg1: memref<8x32xf32, #tpu.memory_space<vmem>>, %arg2: memref<8x32xf32, #tpu.memory_space<vmem>>, %arg3: memref<8x32xf32, #tpu.memory_space<vmem>>, %arg4: memref<32x128xf32, #tpu.memory_space<vmem>>, %arg5: memref<32x128xf32, #tpu.memory_space<vmem>>, %arg6: memref<1x128xf32, #tpu.memory_space<vmem>>, %arg7: memref<32x128xf32, #tpu.memory_space<vmem>>, %arg8: memref<1x128xf32, #tpu.memory_space<vmem>>, %arg9: memref<8x128xf32, #tpu.memory_space<vmem>>, %arg10: memref<8x32xf32, #tpu.memory_space<vmem>>, %arg11: memref<8x32xf32, #tpu.memory_space<vmem>>) attributes {dimension_semantics = [#tpu.dimension_semantics<arbitrary>], iteration_bounds = array<i64: 1>, scalar_prefetch = 0 : i64, scratch_operands = 0 : i64, tpu.core_type = #tpu.core_type<tc>, window_params = [{pipeline_mode = #tpu.pipeline_mode<synchronous>, transform_indices = @transform_0, window_bounds = array<i64: 8, 32>}, {pipeline_mode = #tpu.pipeline_mode<synchronous>, transform_indices = @transform_1, window_bounds = array<i64: 8, 32>}, {pipeline_mode = #tpu.pipeline_mode<synchronous>, transform_indices = @transform_2, window_bounds = array<i64: 8, 32>}, {pipeline_mode = #tpu.pipeline_mode<synchronous>, transform_indices = @transform_3, window_bounds = array<i64: 32, 128>}, {pipeline_mode = #tpu.pipeline_mode<synchronous>, transform_indices = @transform_4, window_bounds = array<i64: 32, 128>}, {pipeline_mode = #tpu.pipeline_mode<synchronous>, transform_indices = @transform_5, window_bounds = array<i64: 1, 128>}, {pipeline_mode = #tpu.pipeline_mode<synchronous>, transform_indices = @transform_6, window_bounds = array<i64: 32, 128>}, {pipeline_mode = #tpu.pipeline_mode<synchronous>, transform_indices = @transform_7, window_bounds = array<i64: 1, 128>}, {pipeline_mode = #tpu.pipeline_mode<synchronous>, transform_indices = @transform_8, window_bounds = array<i64: 8, 128>}, {pipeline_mode = #tpu.pipeline_mode<synchronous>, transform_indices = @transform_9, window_bounds = array<i64: 8, 32>}, {pipeline_mode = #tpu.pipeline_mode<synchronous>, transform_indices = @transform_10, window_bounds = array<i64: 8, 32>}]} {
    %c0 = arith.constant 0 : index
    %c0_0 = arith.constant 0 : index
    %0 = vector.load %arg1[%c0, %c0_0] : memref<8x32xf32, #tpu.memory_space<vmem>>, vector<8x32xf32>
    %c0_1 = arith.constant 0 : index
    %c0_2 = arith.constant 0 : index
    %1 = vector.load %arg2[%c0_1, %c0_2] : memref<8x32xf32, #tpu.memory_space<vmem>>, vector<8x32xf32>
    %c0_3 = arith.constant 0 : index
    %c0_4 = arith.constant 0 : index
    %2 = vector.load %arg3[%c0_3, %c0_4] : memref<8x32xf32, #tpu.memory_space<vmem>>, vector<8x32xf32>
    %c0_5 = arith.constant 0 : index
    %c0_6 = arith.constant 0 : index
    %3 = vector.load %arg4[%c0_5, %c0_6] : memref<32x128xf32, #tpu.memory_space<vmem>>, vector<32x128xf32>
    %cst = arith.constant dense<0.000000e+00> : vector<8x128xf32>
    %4 = tpu.matmul %0, %3, %cst {dimension_numbers = #tpu.dot_dimension_numbers<[1], [0], [0], [1], [0, 0, 1, 1], [], []>} : vector<8x32xf32>, vector<32x128xf32>, vector<8x128xf32> -> vector<8x128xf32>
    %c0_7 = arith.constant 0 : index
    %c0_8 = arith.constant 0 : index
    %5 = vector.load %arg5[%c0_7, %c0_8] : memref<32x128xf32, #tpu.memory_space<vmem>>, vector<32x128xf32>
    %cst_9 = arith.constant dense<0.000000e+00> : vector<8x128xf32>
    %6 = tpu.matmul %1, %5, %cst_9 {dimension_numbers = #tpu.dot_dimension_numbers<[1], [0], [0], [1], [0, 0, 1, 1], [], []>} : vector<8x32xf32>, vector<32x128xf32>, vector<8x128xf32> -> vector<8x128xf32>
    %7 = arith.addf %4, %6 : vector<8x128xf32>
    %c0_10 = arith.constant 0 : index
    %c0_11 = arith.constant 0 : index
    %8 = vector.load %arg6[%c0_10, %c0_11] : memref<1x128xf32, #tpu.memory_space<vmem>>, vector<1x128xf32>
    %9 = vector.broadcast %8 : vector<1x128xf32> to vector<8x128xf32>
    %10 = arith.addf %7, %9 : vector<8x128xf32>
    %11 = vector.extract_strided_slice %10 {offsets = [0, 0], sizes = [8, 32], strides = [1, 1]} : vector<8x128xf32> to vector<8x32xf32>
    %12 = arith.negf %11 : vector<8x32xf32>
    %13 = math.exp %12 : vector<8x32xf32>
    %cst_12 = arith.constant 1.000000e+00 : f32
    %14 = vector.broadcast %cst_12 : f32 to vector<8x32xf32>
    %15 = arith.addf %14, %13 : vector<8x32xf32>
    %16 = arith.divf %14, %15 : vector<8x32xf32>
    %17 = vector.extract_strided_slice %10 {offsets = [0, 32], sizes = [8, 32], strides = [1, 1]} : vector<8x128xf32> to vector<8x32xf32>
    %18 = arith.negf %17 : vector<8x32xf32>
    %19 = math.exp %18 : vector<8x32xf32>
    %cst_13 = arith.constant 1.000000e+00 : f32
    %20 = vector.broadcast %cst_13 : f32 to vector<8x32xf32>
    %21 = arith.addf %20, %19 : vector<8x32xf32>
    %22 = arith.divf %20, %21 : vector<8x32xf32>
    %23 = vector.extract_strided_slice %10 {offsets = [0, 64], sizes = [8, 32], strides = [1, 1]} : vector<8x128xf32> to vector<8x32xf32>
    %24 = math.tanh %23 : vector<8x32xf32>
    %25 = vector.extract_strided_slice %10 {offsets = [0, 96], sizes = [8, 32], strides = [1, 1]} : vector<8x128xf32> to vector<8x32xf32>
    %26 = arith.negf %25 : vector<8x32xf32>
    %27 = math.exp %26 : vector<8x32xf32>
    %cst_14 = arith.constant 1.000000e+00 : f32
    %28 = vector.broadcast %cst_14 : f32 to vector<8x32xf32>
    %29 = arith.addf %28, %27 : vector<8x32xf32>
    %30 = arith.divf %28, %29 : vector<8x32xf32>
    %31 = arith.mulf %22, %2 : vector<8x32xf32>
    %32 = arith.mulf %16, %24 : vector<8x32xf32>
    %33 = arith.addf %31, %32 : vector<8x32xf32>
    %34 = math.tanh %33 : vector<8x32xf32>
    %35 = arith.mulf %30, %34 : vector<8x32xf32>
    %c0_15 = arith.constant 0 : index
    %c0_16 = arith.constant 0 : index
    %36 = vector.load %arg10[%c0_15, %c0_16] : memref<8x32xf32, #tpu.memory_space<vmem>>, vector<8x32xf32>
    tpu.vector_store %arg10[%c0_15, %c0_16], %35 {strides = array<i32>} : memref<8x32xf32, #tpu.memory_space<vmem>>, vector<8x32xf32>,
    %c0_17 = arith.constant 0 : index
    %c0_18 = arith.constant 0 : index
    %37 = vector.load %arg11[%c0_17, %c0_18] : memref<8x32xf32, #tpu.memory_space<vmem>>, vector<8x32xf32>
    tpu.vector_store %arg11[%c0_17, %c0_18], %33 {strides = array<i32>} : memref<8x32xf32, #tpu.memory_space<vmem>>, vector<8x32xf32>,
    %c0_19 = arith.constant 0 : index
    %c0_20 = arith.constant 0 : index
    %38 = vector.load %arg7[%c0_19, %c0_20] : memref<32x128xf32, #tpu.memory_space<vmem>>, vector<32x128xf32>
    %cst_21 = arith.constant dense<0.000000e+00> : vector<8x128xf32>
    %39 = tpu.matmul %35, %38, %cst_21 {dimension_numbers = #tpu.dot_dimension_numbers<[1], [0], [0], [1], [0, 0, 1, 1], [], []>} : vector<8x32xf32>, vector<32x128xf32>, vector<8x128xf32> -> vector<8x128xf32>
    %c0_22 = arith.constant 0 : index
    %c0_23 = arith.constant 0 : index
    %40 = vector.load %arg8[%c0_22, %c0_23] : memref<1x128xf32, #tpu.memory_space<vmem>>, vector<1x128xf32>
    %41 = vector.broadcast %40 : vector<1x128xf32> to vector<8x128xf32>
    %42 = arith.addf %39, %41 : vector<8x128xf32>
    %cst_24 = arith.constant dense<0xFF800000> : vector<8xf32>
    %43 = vector.multi_reduction <maximumf>, %42, %cst_24 [1] : vector<8x128xf32> to vector<8xf32>
    %44 = vector.shape_cast %43 : vector<8xf32> to vector<8x1xf32>
    %45 = vector.broadcast %44 : vector<8x1xf32> to vector<8x128xf32>
    %46 = arith.subf %42, %45 : vector<8x128xf32>
    %47 = math.exp %46 : vector<8x128xf32>
    %cst_25 = arith.constant dense<0.000000e+00> : vector<8xf32>
    %48 = vector.multi_reduction <add>, %47, %cst_25 [1] : vector<8x128xf32> to vector<8xf32>
    %49 = vector.shape_cast %48 : vector<8xf32> to vector<8x1xf32>
    %50 = math.log %49 : vector<8x1xf32>
    %51 = arith.addf %50, %44 : vector<8x1xf32>
    %52 = vector.broadcast %51 : vector<8x1xf32> to vector<8x128xf32>
    %53 = arith.subf %42, %52 : vector<8x128xf32>
    %c0_26 = arith.constant 0 : index
    %c0_27 = arith.constant 0 : index
    %54 = vector.load %arg9[%c0_26, %c0_27] : memref<8x128xf32, #tpu.memory_space<vmem>>, vector<8x128xf32>
    tpu.vector_store %arg9[%c0_26, %c0_27], %53 {strides = array<i32>} : memref<8x128xf32, #tpu.memory_space<vmem>>, vector<8x128xf32>,
    return
  }
  func.func @transform_0(%arg0: i32) -> (i32, i32) {
    %c0_i32 = arith.constant 0 : i32
    %c0_i32_0 = arith.constant 0 : i32
    %c0_i32_1 = arith.constant 0 : i32
    return %c0_i32, %c0_i32_0 : i32, i32
  }
  func.func @transform_1(%arg0: i32) -> (i32, i32) {
    %c0_i32 = arith.constant 0 : i32
    %c0_i32_0 = arith.constant 0 : i32
    %c0_i32_1 = arith.constant 0 : i32
    return %c0_i32, %c0_i32_0 : i32, i32
  }
  func.func @transform_2(%arg0: i32) -> (i32, i32) {
    %c0_i32 = arith.constant 0 : i32
    %c0_i32_0 = arith.constant 0 : i32
    %c0_i32_1 = arith.constant 0 : i32
    return %c0_i32, %c0_i32_0 : i32, i32
  }
  func.func @transform_3(%arg0: i32) -> (i32, i32) {
    %c0_i32 = arith.constant 0 : i32
    %c0_i32_0 = arith.constant 0 : i32
    %c0_i32_1 = arith.constant 0 : i32
    return %c0_i32, %c0_i32_0 : i32, i32
  }
  func.func @transform_4(%arg0: i32) -> (i32, i32) {
    %c0_i32 = arith.constant 0 : i32
    %c0_i32_0 = arith.constant 0 : i32
    %c0_i32_1 = arith.constant 0 : i32
    return %c0_i32, %c0_i32_0 : i32, i32
  }
  func.func @transform_5(%arg0: i32) -> (i32, i32) {
    %c0_i32 = arith.constant 0 : i32
    %c0_i32_0 = arith.constant 0 : i32
    %c0_i32_1 = arith.constant 0 : i32
    return %c0_i32, %c0_i32_0 : i32, i32
  }
  func.func @transform_6(%arg0: i32) -> (i32, i32) {
    %c0_i32 = arith.constant 0 : i32
    %c0_i32_0 = arith.constant 0 : i32
    %c0_i32_1 = arith.constant 0 : i32
    return %c0_i32, %c0_i32_0 : i32, i32
  }
  func.func @transform_7(%arg0: i32) -> (i32, i32) {
    %c0_i32 = arith.constant 0 : i32
    %c0_i32_0 = arith.constant 0 : i32
    %c0_i32_1 = arith.constant 0 : i32
    return %c0_i32, %c0_i32_0 : i32, i32
  }
  func.func @transform_8(%arg0: i32) -> (i32, i32) {
    %c0_i32 = arith.constant 0 : i32
    %c0_i32_0 = arith.constant 0 : i32
    %c0_i32_1 = arith.constant 0 : i32
    return %c0_i32, %c0_i32_0 : i32, i32
  }
  func.func @transform_9(%arg0: i32) -> (i32, i32) {
    %c0_i32 = arith.constant 0 : i32
    %c0_i32_0 = arith.constant 0 : i32
    %c0_i32_1 = arith.constant 0 : i32
    return %c0_i32, %c0_i32_0 : i32, i32
  }
  func.func @transform_10(%arg0: i32) -> (i32, i32) {
    %c0_i32 = arith.constant 0 : i32
    %c0_i32_0 = arith.constant 0 : i32
    %c0_i32_1 = arith.constant 0 : i32
    return %c0_i32, %c0_i32_0 : i32, i32
  }
}

</mosaic_0001>

<llo_original>
// kernel: tpu_custom_call.1
$region0: #{tpu_custom_call.1}
  #allocation0 [shape = 'u32[]', space=smem, size = 0x4, offset = 0x4, fixed_abs, tag = 'smem constant byte address 0x4 - core index']
  #allocation1 [shape = 'u32[144,128]{1,0:T(1,128)}', space=vmem, size = 0x12000, scoped, tag = 'internal scratch']
  %s0 = inlined_call_operand.hbm [shape: f32[8,32], index: 0, kind: input, shape index: {}]
  %s1 = inlined_call_operand.hbm [shape: f32[8,32], index: 1, kind: input, shape index: {}]
  %s2 = inlined_call_operand.hbm [shape: f32[8,32], index: 2, kind: input, shape index: {}]
  %s3 = inlined_call_operand.hbm [shape: f32[32,128], index: 3, kind: input, shape index: {}]
  %s4 = inlined_call_operand.hbm [shape: f32[32,128], index: 4, kind: input, shape index: {}]
  %s5 = inlined_call_operand.vmem [shape: f32[1,128], index: 5, kind: input, shape index: {}]
  %s6 = inlined_call_operand.hbm [shape: f32[32,128], index: 6, kind: input, shape index: {}]
  %s7 = inlined_call_operand.vmem [shape: f32[1,128], index: 7, kind: input, shape index: {}]
  %s8 = inlined_call_operand.hbm [shape: f32[8,128], index: 8, kind: output, shape index: {0}]
  %s9 = inlined_call_operand.hbm [shape: f32[8,32], index: 9, kind: output, shape index: {1}]
  %s10 = inlined_call_operand.hbm [shape: f32[8,32], index: 10, kind: output, shape index: {2}]
  %11 = xla_tuple %s8, %s9, %s10
  %s12 = sld [smem:[#allocation0]]
  $region82: #{tpu_custom_call.1} parent=0
    _
  %s14 = ssub.s32 1, %s12
  %s15 = scalar_select 0, %s14, %s12
  $region1: #{tpu_custom_call.1} parent=0
    #allocation2 [shape = 'u8[4096]{0}', space=vmem, size = 0x1000, scoped, tag = 'input window, operand 0, single buffered']
    #allocation3 [shape = 's32[1]{0}', space=sflag, size = 0x4, scoped, tag = 'scoped memory for tpu_custom_call.1']
    #allocation4 [shape = 's32[1]{0}', space=sflag, size = 0x4, scoped, tag = 'scoped memory for tpu_custom_call.1']
    #allocation5 [shape = 'u8[4096]{0}', space=vmem, size = 0x1000, scoped, tag = 'input window, operand 1, single buffered']
    #allocation6 [shape = 's32[1]{0}', space=sflag, size = 0x4, scoped, tag = 'scoped memory for tpu_custom_call.1']
    #allocation7 [shape = 'u8[4096]{0}', space=vmem, size = 0x1000, scoped, tag = 'input window, operand 2, single buffered']
    #allocation8 [shape = 'u8[16384]{0}', space=vmem, size = 0x4000, scoped, tag = 'input window, operand 3, single buffered']
    #allocation9 [shape = 's32[1]{0}', space=sflag, size = 0x4, scoped, tag = 'scoped memory for tpu_custom_call.1']
    #allocation10 [shape = 'u8[16384]{0}', space=vmem, size = 0x4000, scoped, tag = 'input window, operand 4, single buffered']
    #allocation11 [shape = 'u8[16384]{0}', space=vmem, size = 0x4000, scoped, tag = 'input window, operand 6, single buffered']
    #allocation12 [shape = 's32[1]{0}', space=sflag, size = 0x4, scoped, tag = 'scoped memory for tpu_custom_call.1']
    #allocation13 [shape = 'u8[4096]{0}', space=vmem, size = 0x1000, scoped, tag = 'output window, operand 0, single buffered']
    #allocation14 [shape = 'u8[4096]{0}', space=vmem, size = 0x1000, scoped, tag = 'output window, operand 1, single buffered']
    #allocation15 [shape = 's32[1]{0}', space=sflag, size = 0x4, scoped, tag = 'scoped memory for tpu_custom_call.1']
    #allocation16 [shape = 'u8[4096]{0}', space=vmem, size = 0x1000, scoped, tag = 'output window, operand 2, single buffered']
    %16 = vsyncpa [#allocation3], 0
    %17 = vsyncpa [#allocation6], 0
    %18 = vsyncpa [#allocation9], 0
    %19 = vsyncpa [#allocation12], 0
    %20 = vsyncpa [#allocation4], 0
    %21 = vsyncpa [#allocation15], 0
    // Predicated region
    $region2: #{tpu_custom_call.1} parent=1 // pred_check
      _
    $region3: #{tpu_custom_call.1} parent=1 // pred_check_branch
      %23 = sbr.rel (0) target = $region5
    $region4: #{tpu_custom_call.1} parent=1 // pred_region
      %s25 = ssub.s32 128, 128
      %26 = vsyncadd [#allocation3], %s25
      %s28 = sshll.u32 [#allocation2], 4
      %s29 = int_to_ptr.vmem [resolvable:$true] %s28
      %31 = dma.hbm_to_vmem [thread:$0]  %s0, 128, %s29, [#allocation3]
    $region5: #{tpu_custom_call.1} parent=1 // pred_fallthru
      _
    // Predicated region
    $region6: #{tpu_custom_call.1} parent=1 // pred_check
      _
    $region7: #{tpu_custom_call.1} parent=1 // pred_check_branch
      %33 = sbr.rel (0) target = $region9
    $region8: #{tpu_custom_call.1} parent=1 // pred_region
      %s35 = ssub.s32 128, 128
      %36 = vsyncadd [#allocation6], %s35
      %s38 = sshll.u32 [#allocation5], 4
      %s39 = int_to_ptr.vmem [resolvable:$true] %s38
      %41 = dma.hbm_to_vmem [thread:$0]  %s1, 128, %s39, [#allocation6]
    $region9: #{tpu_custom_call.1} parent=1 // pred_fallthru
      _
    // Predicated region
    $region10: #{tpu_custom_call.1} parent=1 // pred_check
      _
    $region11: #{tpu_custom_call.1} parent=1 // pred_check_branch
      %43 = sbr.rel (0) target = $region13
    $region12: #{tpu_custom_call.1} parent=1 // pred_region
      %s45 = ssub.s32 128, 128
      %46 = vsyncadd [#allocation6], %s45
      %s48 = sshll.u32 [#allocation7], 4
      %s49 = int_to_ptr.vmem [resolvable:$true] %s48
      %51 = dma.hbm_to_vmem [thread:$0]  %s2, 128, %s49, [#allocation6]
    $region13: #{tpu_custom_call.1} parent=1 // pred_fallthru
      _
    // Predicated region
    $region14: #{tpu_custom_call.1} parent=1 // pred_check
      _
    $region15: #{tpu_custom_call.1} parent=1 // pred_check_branch
      %53 = sbr.rel (0) target = $region17
    $region16: #{tpu_custom_call.1} parent=1 // pred_region
      %s55 = ssub.s32 512, 512
      %56 = vsyncadd [#allocation9], %s55
      %s57 = sshll.u32 [#allocation8], 4
      %s58 = int_to_ptr.vmem [resolvable:$true] %s57
      %63 = dma.hbm_to_vmem [thread:$0]  %s3, 512, %s58, [#allocation9], 128, 128, 8
    $region17: #{tpu_custom_call.1} parent=1 // pred_fallthru
      _
    // Predicated region
    $region18: #{tpu_custom_call.1} parent=1 // pred_check
      _
    $region19: #{tpu_custom_call.1} parent=1 // pred_check_branch
      %65 = sbr.rel (0) target = $region21
    $region20: #{tpu_custom_call.1} parent=1 // pred_region
      %s67 = ssub.s32 512, 512
      %68 = vsyncadd [#allocation9], %s67
      %s69 = sshll.u32 [#allocation10], 4
      %s70 = int_to_ptr.vmem [resolvable:$true] %s69
      %75 = dma.hbm_to_vmem [thread:$0]  %s4, 512, %s70, [#allocation9], 128, 128, 8
    $region21: #{tpu_custom_call.1} parent=1 // pred_fallthru
      _
    // Predicated region
    $region22: #{tpu_custom_call.1} parent=1 // pred_check
      _
    $region23: #{tpu_custom_call.1} parent=1 // pred_check_branch
      %77 = sbr.rel (0) target = $region25
    $region24: #{tpu_custom_call.1} parent=1 // pred_region
      _
    $region25: #{tpu_custom_call.1} parent=1 // pred_fallthru
      _
    // Predicated region
    $region26: #{tpu_custom_call.1} parent=1 // pred_check
      _
    $region27: #{tpu_custom_call.1} parent=1 // pred_check_branch
      %79 = sbr.rel (0) target = $region29
    $region28: #{tpu_custom_call.1} parent=1 // pred_region
      %s81 = ssub.s32 512, 512
      %82 = vsyncadd [#allocation12], %s81
      %s83 = sshll.u32 [#allocation11], 4
      %s84 = int_to_ptr.vmem [resolvable:$true] %s83
      %89 = dma.hbm_to_vmem [thread:$0]  %s6, 512, %s84, [#allocation12], 128, 128, 8
    $region29: #{tpu_custom_call.1} parent=1 // pred_fallthru
      _
    // Predicated region
    $region30: #{tpu_custom_call.1} parent=1 // pred_check
      _
    $region31: #{tpu_custom_call.1} parent=1 // pred_check_branch
      %91 = sbr.rel (0) target = $region33
    $region32: #{tpu_custom_call.1} parent=1 // pred_region
      _
    $region33: #{tpu_custom_call.1} parent=1 // pred_fallthru
      _
    // Predicated region
    $region34: #{tpu_custom_call.1} parent=1 // pred_check
      _
    $region35: #{tpu_custom_call.1} parent=1 // pred_check_branch
      %93 = sbr.rel (0) target = $region37
    $region36: #{tpu_custom_call.1} parent=1 // pred_region
      %94 = dma.done [#allocation3], 128
    $region37: #{tpu_custom_call.1} parent=1 // pred_fallthru
      _
    // Predicated region
    $region38: #{tpu_custom_call.1} parent=1 // pred_check
      _
    $region39: #{tpu_custom_call.1} parent=1 // pred_check_branch
      %96 = sbr.rel (0) target = $region41
    $region40: #{tpu_custom_call.1} parent=1 // pred_region
      %97 = dma.done [#allocation6], 128
    $region41: #{tpu_custom_call.1} parent=1 // pred_fallthru
      _
    // Predicated region
    $region42: #{tpu_custom_call.1} parent=1 // pred_check
      _
    $region43: #{tpu_custom_call.1} parent=1 // pred_check_branch
      %99 = sbr.rel (0) target = $region45
    $region44: #{tpu_custom_call.1} parent=1 // pred_region
      %100 = dma.done [#allocation6], 128
    $region45: #{tpu_custom_call.1} parent=1 // pred_fallthru
      _
    // Predicated region
    $region46: #{tpu_custom_call.1} parent=1 // pred_check
      _
    $region47: #{tpu_custom_call.1} parent=1 // pred_check_branch
      %102 = sbr.rel (0) target = $region49
    $region48: #{tpu_custom_call.1} parent=1 // pred_region
      %103 = dma.done [#allocation9], 512
    $region49: #{tpu_custom_call.1} parent=1 // pred_fallthru
      _
    // Predicated region
    $region50: #{tpu_custom_call.1} parent=1 // pred_check
      _
    $region51: #{tpu_custom_call.1} parent=1 // pred_check_branch
      %105 = sbr.rel (0) target = $region53
    $region52: #{tpu_custom_call.1} parent=1 // pred_region
      %106 = dma.done [#allocation9], 512
    $region53: #{tpu_custom_call.1} parent=1 // pred_fallthru
      _
    // Predicated region
    $region54: #{tpu_custom_call.1} parent=1 // pred_check
      _
    $region55: #{tpu_custom_call.1} parent=1 // pred_check_branch
      %108 = sbr.rel (0) target = $region57
    $region56: #{tpu_custom_call.1} parent=1 // pred_region
      %109 = dma.done [#allocation12], 512
    $region57: #{tpu_custom_call.1} parent=1 // pred_fallthru
      _
    %v110 = vld [vmem:[#allocation2] sm:$0xff]
    %v111 = vld [vmem:[#allocation5] sm:$0xff]
    %v112 = vld [vmem:[#allocation7] sm:$0xff]
    %v113 = vld [vmem:[#allocation8] sm:$0xff]
    %v114 = vld [vmem:[#allocation8 + $0x8] sm:$0xff]
    %v115 = vld [vmem:[#allocation8 + $0x10] sm:$0xff]
    %v116 = vld [vmem:[#allocation8 + $0x18] sm:$0xff]
    %v117 = vld [vmem:[#allocation10] sm:$0xff]
    %v118 = vld [vmem:[#allocation10 + $0x8] sm:$0xff]
    %v119 = vld [vmem:[#allocation10 + $0x10] sm:$0xff]
    %v120 = vld [vmem:[#allocation10 + $0x18] sm:$0xff]
    %vm121 = vcmask 261120
    %v123 = vsel %vm121, %v111, 0
    %125 = vmatprep.subr.mxu0 0.0
    %126 = vmatpush1.msra.mxu0 %v117
    %127 = vmatprep.subr.mxu0 0.0
    %128 = vmatpush1.msra.mxu0 %v118
    %129 = vmatprep.subr.mxu0 0.0
    %130 = vmatpush1.msra.mxu0 %v119
    %131 = vmatprep.subr.mxu0 0.0
    %132 = vmatpush1.msra.mxu0 %v120
    %133 = vmatprep.subr.mxu0 0.0
    %134 = vmatpush1.msra.mxu0 0.0
    %135 = vmatprep.subr.mxu0 0.0
    %136 = vmatpush1.msra.mxu0 0.0
    %137 = vmatprep.subr.mxu0 0.0
    %138 = vmatpush1.msra.mxu0 0.0
    %139 = vmatprep.subr.mxu0 0.0
    %140 = vmatpush1.msra.mxu0 0.0
    %141 = vmatprep.subr.mxu0 0.0
    %142 = vmatpush1.msra.mxu0 0.0
    %143 = vmatprep.subr.mxu0 0.0
    %144 = vmatpush1.msra.mxu0 0.0
    %145 = vmatprep.subr.mxu0 0.0
    %146 = vmatpush1.msra.mxu0 0.0
    %147 = vmatprep.subr.mxu0 0.0
    %148 = vmatpush1.msra.mxu0 0.0
    %149 = vmatprep.subr.mxu0 0.0
    %150 = vmatpush1.msra.mxu0 0.0
    %151 = vmatprep.subr.mxu0 0.0
    %152 = vmatpush1.msra.mxu0 0.0
    %153 = vmatprep.subr.mxu0 0.0
    %154 = vmatpush1.msra.mxu0 0.0
    %155 = vmatprep.subr.mxu0 0.0
    %156 = vmatpush1.msra.mxu0 0.0
    %157 = vmatprep.subr.mxu0 0.0
    %158 = vmatpush1.msra.mxu0 0.0
    %159 = vmatprep.subr.mxu0 0.0
    %160 = vmatpush1.msra.mxu0 0.0
    %161 = vmatprep.subr.mxu0 0.0
    %162 = vmatpush1.msra.mxu0 0.0
    %163 = vmatprep.subr.mxu0 0.0
    %164 = vmatpush1.msra.mxu0 0.0
    %165 = vmatprep.subr.mxu0 0.0
    %166 = vmatpush1.msra.mxu0 0.0
    %167 = vmatprep.subr.mxu0 0.0
    %168 = vmatpush1.msra.mxu0 0.0
    %169 = vmatprep.subr.mxu0 0.0
    %170 = vmatpush1.msra.mxu0 0.0
    %171 = vmatprep.subr.mxu0 0.0
    %172 = vmatpush1.msra.mxu0 0.0
    %173 = vmatprep.subr.mxu0 0.0
    %174 = vmatpush1.msra.mxu0 0.0
    %175 = vmatprep.subr.mxu0 0.0
    %176 = vmatpush1.msra.mxu0 0.0
    %177 = vmatprep.subr.mxu0 0.0
    %178 = vmatpush1.msra.mxu0 0.0
    %179 = vmatprep.subr.mxu0 0.0
    %180 = vmatpush1.msra.mxu0 0.0
    %181 = vmatprep.subr.mxu0 0.0
    %182 = vmatpush1.msra.mxu0 0.0
    %183 = vmatprep.subr.mxu0 0.0
    %184 = vmatpush1.msra.mxu0 0.0
    %185 = vmatprep.subr.mxu0 0.0
    %186 = vmatpush1.msra.mxu0 0.0
    %187 = vmatprep.subr.mxu0 0.0
    %188 = vmatpush1.msra.mxu0 0.0
    %189 = vmatprep.mubr.f32.mxu0 0.0
    %190 = vmatmul.mubr.f32.gmra.mrb[0].mxu0 %v123
    %v191 = vpop.f32.mrb[0].mxu0
    %v192 = vadd.f32 0.0, %v191
    %v193 = vpop.f32.mrb[0].mxu0
    %194 = vdwg.mxu0
    %v196 = vsel %vm121, %v110, 0
    %198 = vmatprep.subr.mxu0 0.0
    %199 = vmatpush1.msra.mxu0 %v113
    %200 = vmatprep.subr.mxu0 0.0
    %201 = vmatpush1.msra.mxu0 %v114
    %202 = vmatprep.subr.mxu0 0.0
    %203 = vmatpush1.msra.mxu0 %v115
    %204 = vmatprep.subr.mxu0 0.0
    %205 = vmatpush1.msra.mxu0 %v116
    %206 = vmatprep.subr.mxu0 0.0
    %207 = vmatpush1.msra.mxu0 0.0
    %208 = vmatprep.subr.mxu0 0.0
    %209 = vmatpush1.msra.mxu0 0.0
    %210 = vmatprep.subr.mxu0 0.0
    %211 = vmatpush1.msra.mxu0 0.0
    %212 = vmatprep.subr.mxu0 0.0
    %213 = vmatpush1.msra.mxu0 0.0
    %214 = vmatprep.subr.mxu0 0.0
    %215 = vmatpush1.msra.mxu0 0.0
    %216 = vmatprep.subr.mxu0 0.0
    %217 = vmatpush1.msra.mxu0 0.0
    %218 = vmatprep.subr.mxu0 0.0
    %219 = vmatpush1.msra.mxu0 0.0
    %220 = vmatprep.subr.mxu0 0.0
    %221 = vmatpush1.msra.mxu0 0.0
    %222 = vmatprep.subr.mxu0 0.0
    %223 = vmatpush1.msra.mxu0 0.0
    %224 = vmatprep.subr.mxu0 0.0
    %225 = vmatpush1.msra.mxu0 0.0
    %226 = vmatprep.subr.mxu0 0.0
    %227 = vmatpush1.msra.mxu0 0.0
    %228 = vmatprep.subr.mxu0 0.0
    %229 = vmatpush1.msra.mxu0 0.0
    %230 = vmatprep.subr.mxu0 0.0
    %231 = vmatpush1.msra.mxu0 0.0
    %232 = vmatprep.subr.mxu0 0.0
    %233 = vmatpush1.msra.mxu0 0.0
    %234 = vmatprep.subr.mxu0 0.0
    %235 = vmatpush1.msra.mxu0 0.0
    %236 = vmatprep.subr.mxu0 0.0
    %237 = vmatpush1.msra.mxu0 0.0
    %238 = vmatprep.subr.mxu0 0.0
    %239 = vmatpush1.msra.mxu0 0.0
    %240 = vmatprep.subr.mxu0 0.0
    %241 = vmatpush1.msra.mxu0 0.0
    %242 = vmatprep.subr.mxu0 0.0
    %243 = vmatpush1.msra.mxu0 0.0
    %244 = vmatprep.subr.mxu0 0.0
    %245 = vmatpush1.msra.mxu0 0.0
    %246 = vmatprep.subr.mxu0 0.0
    %247 = vmatpush1.msra.mxu0 0.0
    %248 = vmatprep.subr.mxu0 0.0
    %249 = vmatpush1.msra.mxu0 0.0
    %250 = vmatprep.subr.mxu0 0.0
    %251 = vmatpush1.msra.mxu0 0.0
    %252 = vmatprep.subr.mxu0 0.0
    %253 = vmatpush1.msra.mxu0 0.0
    %254 = vmatprep.subr.mxu0 0.0
    %255 = vmatpush1.msra.mxu0 0.0
    %256 = vmatprep.subr.mxu0 0.0
    %257 = vmatpush1.msra.mxu0 0.0
    %258 = vmatprep.subr.mxu0 0.0
    %259 = vmatpush1.msra.mxu0 0.0
    %260 = vmatprep.subr.mxu0 0.0
    %261 = vmatpush1.msra.mxu0 0.0
    %262 = vmatprep.mubr.f32.mxu0 0.0
    %263 = vmatmul.mubr.f32.gmra.mrb[0].mxu0 %v196
    %v264 = vpop.f32.mrb[0].mxu0
    %v265 = vadd.f32 %v192, %v264
    %v266 = vpop.f32.mrb[0].mxu0
    %267 = vdwg.mxu0
    %v268 = vld [vmem:[%s5] sm:$0x1]
    %v270 = vlaneseq
    %v271 = vshrl.u32 %v270, 7
    %v272 = vsub.s32 0, %v271
    %v273 = vrot.slane %v268, %v272
    %v275 = vadd.f32 %v265, %v273
    %v276 = vxor.u32 %v275, 2147483648
    %v277 = vmul.f32 %v276, 1.442695
    %v278 = vpow.pop %v277
    %v279 = vadd.f32 %v278, 1.0
    %v280 = vrcp.pop %v279
    %v281 = vmul.f32 1.0, %v280
    %v282 = vtanh.pop %v275
    %284 = vrot.lane.b32.xlu0 %v112, 32
    %v285 = vpop.permute.xlu0 %284
    %v287 = vmul.f32 %v281, %v285
    %289 = vrot.lane.b32.xlu0 %v282, 64
    %v290 = vpop.permute.xlu0 %289
    %v292 = vmul.f32 %v281, %v290
    %294 = vrot.lane.b32.xlu0 %v292, 32
    %v295 = vpop.permute.xlu0 %294
    %v297 = vadd.f32 %v287, %v295
    %v298 = vtanh.pop %v297
    %300 = vrot.lane.b32.xlu0 %v298, 64
    %v301 = vpop.permute.xlu0 %300
    %v303 = vmul.f32 %v281, %v301
    %305 = vrot.lane.b32.xlu0 %v303, 32
    %v306 = vpop.permute.xlu0 %305
    %308 = vst.msk [vmem:[#allocation14] sm:$0xff] %vm121, %v306
    %310 = vrot.lane.b32.xlu0 %v297, 96
    %v311 = vpop.permute.xlu0 %310
    %313 = vst.msk [vmem:[#allocation16] sm:$0xff] %vm121, %v311
    %v314 = vld [vmem:[#allocation11] sm:$0xff]
    %v315 = vld [vmem:[#allocation11 + $0x8] sm:$0xff]
    %v316 = vld [vmem:[#allocation11 + $0x10] sm:$0xff]
    %v317 = vld [vmem:[#allocation11 + $0x18] sm:$0xff]
    %v318 = vld [vmem:[%s7] sm:$0x1]
    %v320 = vlaneseq
    %v321 = vshrl.u32 %v320, 7
    %v322 = vsub.s32 0, %v321
    %v323 = vrot.slane %v318, %v322
    %v325 = vsel %vm121, %v306, 0
    %327 = vmatprep.subr.mxu0 0.0
    %328 = vmatpush1.msra.mxu0 %v314
    %329 = vmatprep.subr.mxu0 0.0
    %330 = vmatpush1.msra.mxu0 %v315
    %331 = vmatprep.subr.mxu0 0.0
    %332 = vmatpush1.msra.mxu0 %v316
    %333 = vmatprep.subr.mxu0 0.0
    %334 = vmatpush1.msra.mxu0 %v317
    %335 = vmatprep.subr.mxu0 0.0
    %336 = vmatpush1.msra.mxu0 0.0
    %337 = vmatprep.subr.mxu0 0.0
    %338 = vmatpush1.msra.mxu0 0.0
    %339 = vmatprep.subr.mxu0 0.0
    %340 = vmatpush1.msra.mxu0 0.0
    %341 = vmatprep.subr.mxu0 0.0
    %342 = vmatpush1.msra.mxu0 0.0
    %343 = vmatprep.subr.mxu0 0.0
    %344 = vmatpush1.msra.mxu0 0.0
    %345 = vmatprep.subr.mxu0 0.0
    %346 = vmatpush1.msra.mxu0 0.0
    %347 = vmatprep.subr.mxu0 0.0
    %348 = vmatpush1.msra.mxu0 0.0
    %349 = vmatprep.subr.mxu0 0.0
    %350 = vmatpush1.msra.mxu0 0.0
    %351 = vmatprep.subr.mxu0 0.0
    %352 = vmatpush1.msra.mxu0 0.0
    %353 = vmatprep.subr.mxu0 0.0
    %354 = vmatpush1.msra.mxu0 0.0
    %355 = vmatprep.subr.mxu0 0.0
    %356 = vmatpush1.msra.mxu0 0.0
    %357 = vmatprep.subr.mxu0 0.0
    %358 = vmatpush1.msra.mxu0 0.0
    %359 = vmatprep.subr.mxu0 0.0
    %360 = vmatpush1.msra.mxu0 0.0
    %361 = vmatprep.subr.mxu0 0.0
    %362 = vmatpush1.msra.mxu0 0.0
    %363 = vmatprep.subr.mxu0 0.0
    %364 = vmatpush1.msra.mxu0 0.0
    %365 = vmatprep.subr.mxu0 0.0
    %366 = vmatpush1.msra.mxu0 0.0
    %367 = vmatprep.subr.mxu0 0.0
    %368 = vmatpush1.msra.mxu0 0.0
    %369 = vmatprep.subr.mxu0 0.0
    %370 = vmatpush1.msra.mxu0 0.0
    %371 = vmatprep.subr.mxu0 0.0
    %372 = vmatpush1.msra.mxu0 0.0
    %373 = vmatprep.subr.mxu0 0.0
    %374 = vmatpush1.msra.mxu0 0.0
    %375 = vmatprep.subr.mxu0 0.0
    %376 = vmatpush1.msra.mxu0 0.0
    %377 = vmatprep.subr.mxu0 0.0
    %378 = vmatpush1.msra.mxu0 0.0
    %379 = vmatprep.subr.mxu0 0.0
    %380 = vmatpush1.msra.mxu0 0.0
    %381 = vmatprep.subr.mxu0 0.0
    %382 = vmatpush1.msra.mxu0 0.0
    %383 = vmatprep.subr.mxu0 0.0
    %384 = vmatpush1.msra.mxu0 0.0
    %385 = vmatprep.subr.mxu0 0.0
    %386 = vmatpush1.msra.mxu0 0.0
    %387 = vmatprep.subr.mxu0 0.0
    %388 = vmatpush1.msra.mxu0 0.0
    %389 = vmatprep.subr.mxu0 0.0
    %390 = vmatpush1.msra.mxu0 0.0
    %391 = vmatprep.mubr.f32.mxu0 0.0
    %392 = vmatmul.mubr.f32.gmra.mrb[0].mxu0 %v325
    %v393 = vpop.f32.mrb[0].mxu0
    %v394 = vadd.f32 %v323, %v393
    %v395 = vpop.f32.mrb[0].mxu0
    %396 = vdwg.mxu0
    %397 = vmax.xlane.f32.xlu0 %v394
    %v398 = vpop.xlane.xlu0 %397
    %v399 = vsub.f32 %v394, %v398
    %v400 = vmul.f32 %v399, 1.442695
    %v401 = vpow.pop %v400
    %402 = vadd.xlane.f32.xlu0 %v401
    %v403 = vpop.xlane.xlu0 %402
    %v404 = vlog2.pop %v403
    %v405 = vmul.f32 %v404, 0.6931472
    %v406 = vadd.f32 %v405, %v398
    %v407 = vsub.f32 %v394, %v406
    %408 = vst [vmem:[#allocation13] sm:$0xff] %v407
    // Predicated region
    $region58: #{tpu_custom_call.1} parent=1 // pred_check
      _
    $region59: #{tpu_custom_call.1} parent=1 // pred_check_branch
      %410 = sbr.rel (0) target = $region61
    $region60: #{tpu_custom_call.1} parent=1 // pred_region
      %s412 = ssub.s32 128, 128
      %413 = vsyncadd [#allocation4], %s412
      %s415 = sshll.u32 [#allocation13], 4
      %s416 = int_to_ptr.vmem [resolvable:$true] %s415
      %418 = dma.vmem_to_hbm [thread:$0]  %s416, 128, %s8, [#allocation4]
    $region61: #{tpu_custom_call.1} parent=1 // pred_fallthru
      _
    // Predicated region
    $region62: #{tpu_custom_call.1} parent=1 // pred_check
      _
    $region63: #{tpu_custom_call.1} parent=1 // pred_check_branch
      %420 = sbr.rel (0) target = $region65
    $region64: #{tpu_custom_call.1} parent=1 // pred_region
      %s422 = ssub.s32 128, 128
      %423 = vsyncadd [#allocation15], %s422
      %s425 = sshll.u32 [#allocation14], 4
      %s426 = int_to_ptr.vmem [resolvable:$true] %s425
      %428 = dma.vmem_to_hbm [thread:$0]  %s426, 128, %s9, [#allocation15]
    $region65: #{tpu_custom_call.1} parent=1 // pred_fallthru
      _
    // Predicated region
    $region66: #{tpu_custom_call.1} parent=1 // pred_check
      _
    $region67: #{tpu_custom_call.1} parent=1 // pred_check_branch
      %430 = sbr.rel (0) target = $region69
    $region68: #{tpu_custom_call.1} parent=1 // pred_region
      %s432 = ssub.s32 128, 128
      %433 = vsyncadd [#allocation15], %s432
      %s435 = sshll.u32 [#allocation16], 4
      %s436 = int_to_ptr.vmem [resolvable:$true] %s435
      %438 = dma.vmem_to_hbm [thread:$0]  %s436, 128, %s10, [#allocation15]
    $region69: #{tpu_custom_call.1} parent=1 // pred_fallthru
      _
    // Predicated region
    $region70: #{tpu_custom_call.1} parent=1 // pred_check
      _
    $region71: #{tpu_custom_call.1} parent=1 // pred_check_branch
      %440 = sbr.rel (0) target = $region73
    $region72: #{tpu_custom_call.1} parent=1 // pred_region
      %441 = dma.done [#allocation4], 128
    $region73: #{tpu_custom_call.1} parent=1 // pred_fallthru
      _
    // Predicated region
    $region74: #{tpu_custom_call.1} parent=1 // pred_check
      _
    $region75: #{tpu_custom_call.1} parent=1 // pred_check_branch
      %443 = sbr.rel (0) target = $region77
    $region76: #{tpu_custom_call.1} parent=1 // pred_region
      %444 = dma.done [#allocation15], 128
    $region77: #{tpu_custom_call.1} parent=1 // pred_fallthru
      _
    // Predicated region
    $region78: #{tpu_custom_call.1} parent=1 // pred_check
      _
    $region79: #{tpu_custom_call.1} parent=1 // pred_check_branch
      %446 = sbr.rel (0) target = $region81
    $region80: #{tpu_custom_call.1} parent=1 // pred_region
      %447 = dma.done [#allocation15], 128
    $region81: #{tpu_custom_call.1} parent=1 // pred_fallthru
      _
    %448 = vsyncpa [#allocation3], 1
    %449 = vsyncpa [#allocation6], 1
    %450 = vsyncpa [#allocation9], 1
    %451 = vsyncpa [#allocation12], 1
    %452 = vsyncpa [#allocation4], 1
    %453 = vsyncpa [#allocation15], 1

</llo_original>
